<compile_context>
chip_gen: v5e
topology: v5e:2x2
jax: 0.10.0
libtpu: 0.0.40
codegen_flags: <defaults>
</compile_context>

<pallas_src>
import jax
import jax.numpy as jnp
from jax.experimental import pallas as pl
from jax.experimental.pallas import tpu as pltpu


def _round_up(x, m):
    return (x + m - 1) // m * m


def _concat_dense_se_kernel(x_ref, wf_ref, bf_ref, ws_ref, we_ref, o_ref):
    # Per grid step:
    #   x_ref : [TM, Min]   multimodal input tile
    #   wf_ref: [Min, Hp]   fusion weight (transposed, zero-padded to 128 lanes)
    #   bf_ref: [1,  Hp]    fusion bias   (zero-padded)
    #   ws_ref: [Hp, SQp]   SE squeeze weight (transposed, zero-padded)
    #   we_ref: [SQp, Hp]   SE excitation weight (transposed, zero-padded)
    #   o_ref : [TM, Hp]
    x = x_ref[...]

    # fusion linear (bias add is VPU work; free under the MXU-bound steady state)
    e = jnp.dot(x, wf_ref[...], preferred_element_type=jnp.float32) + bf_ref[...]

    # SENet gate: squeeze -> relu -> excitation -> sigmoid
    g = jnp.dot(e.astype(ws_ref.dtype), ws_ref[...],
                preferred_element_type=jnp.float32)
    g = jnp.maximum(g, 0.0)
    g = jnp.dot(g.astype(we_ref.dtype), we_ref[...],
                preferred_element_type=jnp.float32)
    g = jax.nn.sigmoid(g)  # EUP slot -> effectively free

    # gate multiply in f32, single final cast
    o_ref[...] = (e * g).astype(o_ref.dtype)


def concat_dense_se(x, wf_t, bf, ws_t, we_t, *, block_m=512):
    """x: [B, Min] -> [B, H].

    wf_t: [Min, H] fusion weight (transposed), bf: [1, H] fusion bias,
    ws_t: [H, sq] squeeze weight (transposed), we_t: [sq, H] excitation weight
    (transposed).  Batch is tiled over a 1-D parallel grid; weights are padded
    to lane-dense (multiple-of-128) widths with zeros (exact math) and stay
    VMEM-resident via constant index_maps.
    """
    B, Min = x.shape
    H = wf_t.shape[1]
    sq = ws_t.shape[1]
    dtype = x.dtype

    # ---- lane-dense padding of the feature dims (zeros keep results exact) ----
    Hp = _round_up(max(H, 128), 128)
    SQp = _round_up(max(sq, 128), 128)

    wf_p = jnp.zeros((Min, Hp), wf_t.dtype).at[:, :H].set(wf_t)
    bf_p = jnp.zeros((1, Hp), bf.dtype).at[:, :H].set(bf)
    ws_p = jnp.zeros((Hp, SQp), ws_t.dtype).at[:H, :sq].set(ws_t)
    we_p = jnp.zeros((SQp, Hp), we_t.dtype).at[:sq, :H].set(we_t)

    # ---- batch tiling: TM rows per grid step, batch padded to a multiple ----
    TM = min(block_m, _round_up(B, 8))
    Bp = _round_up(B, TM)
    x_p = x if Bp == B else jnp.zeros((Bp, Min), dtype).at[:B, :].set(x)

    grid = (pl.cdiv(Bp, TM),)

    flops = 2 * Bp * (Min * Hp + Hp * SQp + SQp * Hp) + 3 * Bp * Hp
    bytes_accessed = 4 * (Bp * Min + Min * Hp + Hp + Hp * SQp + SQp * Hp + Bp * Hp)
    cost = pl.CostEstimate(flops=flops,
                           transcendentals=Bp * Hp,          # sigmoid
                           bytes_accessed=bytes_accessed)

    out_p = pl.pallas_call(
        _concat_dense_se_kernel,
        out_shape=jax.ShapeDtypeStruct((Bp, Hp), dtype),
        grid_spec=pltpu.PrefetchScalarGridSpec(
            num_scalar_prefetch=0,
            grid=grid,
            in_specs=[
                pl.BlockSpec((TM, Min), lambda i: (i, 0)),   # x tile (pipelined)
                pl.BlockSpec((Min, Hp), lambda i: (0, 0)),   # fusion W (resident)
                pl.BlockSpec((1, Hp), lambda i: (0, 0)),     # fusion bias (resident)
                pl.BlockSpec((Hp, SQp), lambda i: (0, 0)),   # SE squeeze W (resident)
                pl.BlockSpec((SQp, Hp), lambda i: (0, 0)),   # SE excitation W (resident)
            ],
            out_specs=pl.BlockSpec((TM, Hp), lambda i: (i, 0)),
        ),
        compiler_params=pltpu.CompilerParams(
            dimension_semantics=("parallel",),
        ),
        cost_estimate=cost,
    )(x_p, wf_p, bf_p, ws_p, we_p)

    # slice away batch / lane padding
    return out_p[:B, :H]


def reference(x, wf_t, bf, ws_t, we_t):
    e = x.astype(jnp.float32) @ wf_t.astype(jnp.float32) + bf.astype(jnp.float32)
    g = jnp.maximum(e @ ws_t.astype(jnp.float32), 0.0)
    g = jax.nn.sigmoid(g @ we_t.astype(jnp.float32))
    return (e * g).astype(x.dtype)


if __name__ == "__main__":
    # Module hyper-params (small, consistent with the forward):
    batch = 8
    multimodal_hidden_size = 64
    hidden_size = 32
    se_ratio = 8                     # -> squeeze dim = 4
    sq = hidden_size // se_ratio

    key = jax.random.PRNGKey(0)
    kx, kwf, kbf, kws, kwe = jax.random.split(key, 5)

    x = jax.random.normal(kx, (batch, multimodal_hidden_size), dtype=jnp.float32)

    # Deterministic parameter init (weights stored pre-transposed to [in, out]).
    wf_t = jax.random.normal(kwf, (multimodal_hidden_size, hidden_size), jnp.float32) * 0.05
    bf = jax.random.normal(kbf, (1, hidden_size), jnp.float32) * 0.05
    ws_t = jax.random.normal(kws, (hidden_size, sq), jnp.float32) * 0.05
    we_t = jax.random.normal(kwe, (sq, hidden_size), jnp.float32) * 0.05

    out = jax.block_until_ready(concat_dense_se(x, wf_t, bf, ws_t, we_t))
    ref = reference(x, wf_t, bf, ws_t, we_t)

    assert out.shape == (batch, hidden_size)
    assert jnp.allclose(out, ref, atol=1e-5, rtol=1e-5)
    print("KERNEL_OK")
</pallas_src>

<mosaic_0001>
module attributes {stable_mosaic.version = 11 : i64} {
  func.func @_concat_dense_se_kernel(%arg0: i32, %arg1: memref<8x64xf32, #tpu.memory_space<vmem>>, %arg2: memref<64x128xf32, #tpu.memory_space<vmem>>, %arg3: memref<1x128xf32, #tpu.memory_space<vmem>>, %arg4: memref<128x128xf32, #tpu.memory_space<vmem>>, %arg5: memref<128x128xf32, #tpu.memory_space<vmem>>, %arg6: memref<8x128xf32, #tpu.memory_space<vmem>>) attributes {dimension_semantics = [#tpu.dimension_semantics<parallel>], iteration_bounds = array<i64: 1>, scalar_prefetch = 0 : i64, scratch_operands = 0 : i64, tpu.core_type = #tpu.core_type<tc>, window_params = [{transform_indices = @transform_0, window_bounds = array<i64: 8, 64>}, {pipeline_mode = #tpu.pipeline_mode<synchronous>, transform_indices = @transform_1, window_bounds = array<i64: 64, 128>}, {pipeline_mode = #tpu.pipeline_mode<synchronous>, transform_indices = @transform_2, window_bounds = array<i64: 1, 128>}, {pipeline_mode = #tpu.pipeline_mode<synchronous>, transform_indices = @transform_3, window_bounds = array<i64: 128, 128>}, {pipeline_mode = #tpu.pipeline_mode<synchronous>, transform_indices = @transform_4, window_bounds = array<i64: 128, 128>}, {transform_indices = @transform_5, window_bounds = array<i64: 8, 128>}]} {
    %c0 = arith.constant 0 : index
    %c0_0 = arith.constant 0 : index
    %0 = vector.load %arg1[%c0, %c0_0] : memref<8x64xf32, #tpu.memory_space<vmem>>, vector<8x64xf32>
    %c0_1 = arith.constant 0 : index
    %c0_2 = arith.constant 0 : index
    %1 = vector.load %arg2[%c0_1, %c0_2] : memref<64x128xf32, #tpu.memory_space<vmem>>, vector<64x128xf32>
    %cst = arith.constant dense<0.000000e+00> : vector<8x128xf32>
    %2 = tpu.matmul %0, %1, %cst {dimension_numbers = #tpu.dot_dimension_numbers<[1], [0], [0], [1], [0, 0, 1, 1], [], []>} : vector<8x64xf32>, vector<64x128xf32>, vector<8x128xf32> -> vector<8x128xf32>
    %c0_3 = arith.constant 0 : index
    %c0_4 = arith.constant 0 : index
    %3 = vector.load %arg3[%c0_3, %c0_4] : memref<1x128xf32, #tpu.memory_space<vmem>>, vector<1x128xf32>
    %4 = vector.broadcast %3 : vector<1x128xf32> to vector<8x128xf32>
    %5 = arith.addf %2, %4 : vector<8x128xf32>
    %c0_5 = arith.constant 0 : index
    %c0_6 = arith.constant 0 : index
    %6 = vector.load %arg4[%c0_5, %c0_6] : memref<128x128xf32, #tpu.memory_space<vmem>>, vector<128x128xf32>
    %cst_7 = arith.constant dense<0.000000e+00> : vector<8x128xf32>
    %7 = tpu.matmul %5, %6, %cst_7 {dimension_numbers = #tpu.dot_dimension_numbers<[1], [0], [0], [1], [0, 0, 1, 1], [], []>} : vector<8x128xf32>, vector<128x128xf32>, vector<8x128xf32> -> vector<8x128xf32>
    %cst_8 = arith.constant 0.000000e+00 : f32
    %8 = vector.broadcast %cst_8 : f32 to vector<8x128xf32>
    %9 = arith.maximumf %7, %8 : vector<8x128xf32>
    %c0_9 = arith.constant 0 : index
    %c0_10 = arith.constant 0 : index
    %10 = vector.load %arg5[%c0_9, %c0_10] : memref<128x128xf32, #tpu.memory_space<vmem>>, vector<128x128xf32>
    %cst_11 = arith.constant dense<0.000000e+00> : vector<8x128xf32>
    %11 = tpu.matmul %9, %10, %cst_11 {dimension_numbers = #tpu.dot_dimension_numbers<[1], [0], [0], [1], [0, 0, 1, 1], [], []>} : vector<8x128xf32>, vector<128x128xf32>, vector<8x128xf32> -> vector<8x128xf32>
    %12 = arith.negf %11 : vector<8x128xf32>
    %13 = math.exp %12 : vector<8x128xf32>
    %cst_12 = arith.constant 1.000000e+00 : f32
    %14 = vector.broadcast %cst_12 : f32 to vector<8x128xf32>
    %15 = arith.addf %14, %13 : vector<8x128xf32>
    %16 = arith.divf %14, %15 : vector<8x128xf32>
    %17 = arith.mulf %5, %16 : vector<8x128xf32>
    %c0_13 = arith.constant 0 : index
    %c0_14 = arith.constant 0 : index
    %18 = vector.load %arg6[%c0_13, %c0_14] : memref<8x128xf32, #tpu.memory_space<vmem>>, vector<8x128xf32>
    tpu.vector_store %arg6[%c0_13, %c0_14], %17 {strides = array<i32>} : memref<8x128xf32, #tpu.memory_space<vmem>>, vector<8x128xf32>,
    return
  }
  func.func @transform_0(%arg0: i32) -> (i32, i32) {
    %c0_i32 = arith.constant 0 : i32
    %c0_i32_0 = arith.constant 0 : i32
    return %arg0, %c0_i32 : i32, i32
  }
  func.func @transform_1(%arg0: i32) -> (i32, i32) {
    %c0_i32 = arith.constant 0 : i32
    %c0_i32_0 = arith.constant 0 : i32
    %c0_i32_1 = arith.constant 0 : i32
    return %c0_i32, %c0_i32_0 : i32, i32
  }
  func.func @transform_2(%arg0: i32) -> (i32, i32) {
    %c0_i32 = arith.constant 0 : i32
    %c0_i32_0 = arith.constant 0 : i32
    %c0_i32_1 = arith.constant 0 : i32
    return %c0_i32, %c0_i32_0 : i32, i32
  }
  func.func @transform_3(%arg0: i32) -> (i32, i32) {
    %c0_i32 = arith.constant 0 : i32
    %c0_i32_0 = arith.constant 0 : i32
    %c0_i32_1 = arith.constant 0 : i32
    return %c0_i32, %c0_i32_0 : i32, i32
  }
  func.func @transform_4(%arg0: i32) -> (i32, i32) {
    %c0_i32 = arith.constant 0 : i32
    %c0_i32_0 = arith.constant 0 : i32
    %c0_i32_1 = arith.constant 0 : i32
    return %c0_i32, %c0_i32_0 : i32, i32
  }
  func.func @transform_5(%arg0: i32) -> (i32, i32) {
    %c0_i32 = arith.constant 0 : i32
    %c0_i32_0 = arith.constant 0 : i32
    return %arg0, %c0_i32 : i32, i32
  }
}

</mosaic_0001>

<llo_original>
// kernel: tpu_custom_call.1
$region0: #{tpu_custom_call.1}
  #allocation0 [shape = 'u32[]', space=smem, size = 0x4, offset = 0x4, fixed_abs, tag = 'smem constant byte address 0x4 - core index']
  #allocation1 [shape = 'u32[72,128]{1,0:T(1,128)}', space=vmem, size = 0x9000, scoped, tag = 'internal scratch']
  %s0 = inlined_call_operand.hbm [shape: f32[8,64], index: 0, kind: input, shape index: {}]
  %s1 = inlined_call_operand.hbm [shape: f32[64,128], index: 1, kind: input, shape index: {}]
  %s2 = inlined_call_operand.vmem [shape: f32[1,128], index: 2, kind: input, shape index: {}]
  %s3 = inlined_call_operand.hbm [shape: f32[128,128], index: 3, kind: input, shape index: {}]
  %s4 = inlined_call_operand.hbm [shape: f32[128,128], index: 4, kind: input, shape index: {}]
  %s5 = inlined_call_operand.hbm [shape: f32[8,128], index: 5, kind: output, shape index: {}]
  %s6 = sld [smem:[#allocation0]]
  $region46: #{tpu_custom_call.1} parent=0
    _
  %s8 = ssub.s32 1, %s6
  %s9 = scalar_select 0, %s8, %s6
  $region1: #{tpu_custom_call.1} parent=0
    #allocation2 [shape = 'u8[4096]{0}', space=vmem, size = 0x1000, scoped, tag = 'input window, operand 0, single buffered']
    #allocation3 [shape = 's32[1]{0}', space=sflag, size = 0x4, scoped, tag = 'scoped memory for tpu_custom_call.1']
    #allocation4 [shape = 's32[1]{0}', space=sflag, size = 0x4, scoped, tag = 'scoped memory for tpu_custom_call.1']
    #allocation5 [shape = 'u8[32768]{0}', space=vmem, size = 0x8000, scoped, tag = 'input window, operand 1, single buffered']
    #allocation6 [shape = 's32[1]{0}', space=sflag, size = 0x4, scoped, tag = 'scoped memory for tpu_custom_call.1']
    #allocation7 [shape = 'u8[65536]{0}', space=vmem, size = 0x10000, scoped, tag = 'input window, operand 3, single buffered']
    #allocation8 [shape = 'u8[65536]{0}', space=vmem, size = 0x10000, scoped, tag = 'input window, operand 4, single buffered']
    #allocation9 [shape = 's32[1]{0}', space=sflag, size = 0x4, scoped, tag = 'scoped memory for tpu_custom_call.1']
    #allocation10 [shape = 'u8[4096]{0}', space=vmem, size = 0x1000, scoped, tag = 'output window, operand 0, single buffered']
    %10 = vsyncpa [#allocation3], 0
    %11 = vsyncpa [#allocation6], 0
    %12 = vsyncpa [#allocation9], 0
    %13 = vsyncpa [#allocation4], 0
    // Predicated region
    $region2: #{tpu_custom_call.1} parent=1 // pred_check
      _
    $region3: #{tpu_custom_call.1} parent=1 // pred_check_branch
      %15 = sbr.rel (0) target = $region5
    $region4: #{tpu_custom_call.1} parent=1 // pred_region
      %17 = vsyncadd [#allocation3], 0
      %s19 = sshll.u32 %s0, 4
      %s20 = int_to_ptr.hbm [resolvable:$true] %s19
      %s21 = sshll.u32 [#allocation2], 4
      %s22 = int_to_ptr.vmem [resolvable:$true] %s21
      %24 = dma.hbm_to_vmem [thread:$0]  %s20, 128, %s22, [#allocation3]
    $region5: #{tpu_custom_call.1} parent=1 // pred_fallthru
      _
    // Predicated region
    $region6: #{tpu_custom_call.1} parent=1 // pred_check
      _
    $region7: #{tpu_custom_call.1} parent=1 // pred_check_branch
      %26 = sbr.rel (0) target = $region9
    $region8: #{tpu_custom_call.1} parent=1 // pred_region
      %28 = vsyncadd [#allocation6], 0
      %s29 = sshll.u32 %s1, 4
      %s30 = int_to_ptr.hbm [resolvable:$true] %s29
      %s31 = sshll.u32 [#allocation5], 4
      %s32 = int_to_ptr.vmem [resolvable:$true] %s31
      %37 = dma.hbm_to_vmem [thread:$0]  %s30, 1024, %s32, [#allocation6], 128, 128, 8
    $region9: #{tpu_custom_call.1} parent=1 // pred_fallthru
      _
    // Predicated region
    $region10: #{tpu_custom_call.1} parent=1 // pred_check
      _
    $region11: #{tpu_custom_call.1} parent=1 // pred_check_branch
      %39 = sbr.rel (0) target = $region13
    $region12: #{tpu_custom_call.1} parent=1 // pred_region
      _
    $region13: #{tpu_custom_call.1} parent=1 // pred_fallthru
      _
    // Predicated region
    $region14: #{tpu_custom_call.1} parent=1 // pred_check
      _
    $region15: #{tpu_custom_call.1} parent=1 // pred_check_branch
      %41 = sbr.rel (0) target = $region17
    $region16: #{tpu_custom_call.1} parent=1 // pred_region
      %43 = vsyncadd [#allocation6], 0
      %s44 = sshll.u32 %s3, 4
      %s45 = int_to_ptr.hbm [resolvable:$true] %s44
      %s46 = sshll.u32 [#allocation7], 4
      %s47 = int_to_ptr.vmem [resolvable:$true] %s46
      %52 = dma.hbm_to_vmem [thread:$0]  %s45, 2048, %s47, [#allocation6], 128, 128, 8
    $region17: #{tpu_custom_call.1} parent=1 // pred_fallthru
      _
    // Predicated region
    $region18: #{tpu_custom_call.1} parent=1 // pred_check
      _
    $region19: #{tpu_custom_call.1} parent=1 // pred_check_branch
      %54 = sbr.rel (0) target = $region21
    $region20: #{tpu_custom_call.1} parent=1 // pred_region
      %56 = vsyncadd [#allocation9], 0
      %s57 = sshll.u32 %s4, 4
      %s58 = int_to_ptr.hbm [resolvable:$true] %s57
      %s59 = sshll.u32 [#allocation8], 4
      %s60 = int_to_ptr.vmem [resolvable:$true] %s59
      %65 = dma.hbm_to_vmem [thread:$0]  %s58, 2048, %s60, [#allocation9], 128, 128, 8
    $region21: #{tpu_custom_call.1} parent=1 // pred_fallthru
      _
    // Predicated region
    $region22: #{tpu_custom_call.1} parent=1 // pred_check
      _
    $region23: #{tpu_custom_call.1} parent=1 // pred_check_branch
      %67 = sbr.rel (0) target = $region25
    $region24: #{tpu_custom_call.1} parent=1 // pred_region
      %69 = dma.done [#allocation3], 128
    $region25: #{tpu_custom_call.1} parent=1 // pred_fallthru
      _
    // Predicated region
    $region26: #{tpu_custom_call.1} parent=1 // pred_check
      _
    $region27: #{tpu_custom_call.1} parent=1 // pred_check_branch
      %71 = sbr.rel (0) target = $region29
    $region28: #{tpu_custom_call.1} parent=1 // pred_region
      %73 = dma.done [#allocation6], 1024
    $region29: #{tpu_custom_call.1} parent=1 // pred_fallthru
      _
    // Predicated region
    $region30: #{tpu_custom_call.1} parent=1 // pred_check
      _
    $region31: #{tpu_custom_call.1} parent=1 // pred_check_branch
      %75 = sbr.rel (0) target = $region33
    $region32: #{tpu_custom_call.1} parent=1 // pred_region
      %77 = dma.done [#allocation6], 2048
    $region33: #{tpu_custom_call.1} parent=1 // pred_fallthru
      _
    // Predicated region
    $region34: #{tpu_custom_call.1} parent=1 // pred_check
      _
    $region35: #{tpu_custom_call.1} parent=1 // pred_check_branch
      %79 = sbr.rel (0) target = $region37
    $region36: #{tpu_custom_call.1} parent=1 // pred_region
      %81 = dma.done [#allocation9], 2048
    $region37: #{tpu_custom_call.1} parent=1 // pred_fallthru
      _
    %v82 = vld [vmem:[#allocation2] sm:$0xff]
    %v83 = vld [vmem:[#allocation5] sm:$0xff]
    %v84 = vld [vmem:[#allocation5 + $0x8] sm:$0xff]
    %v85 = vld [vmem:[#allocation5 + $0x10] sm:$0xff]
    %v86 = vld [vmem:[#allocation5 + $0x18] sm:$0xff]
    %v87 = vld [vmem:[#allocation5 + $0x20] sm:$0xff]
    %v88 = vld [vmem:[#allocation5 + $0x28] sm:$0xff]
    %v89 = vld [vmem:[#allocation5 + $0x30] sm:$0xff]
    %v90 = vld [vmem:[#allocation5 + $0x38] sm:$0xff]
    %v91 = vld [vmem:[%s2] sm:$0x1]
    %v93 = vperm.slane %v91, 0
    %vm95 = vcmask 523264
    %v97 = vsel %vm95, %v82, 0
    %99 = vmatpush.msra.mxu0 0.0
    %100 = vmatpush.msra.mxu0 0.0
    %101 = vmatpush.msra.mxu0 0.0
    %102 = vmatpush.msra.mxu0 0.0
    %103 = vmatpush.msra.mxu0 0.0
    %104 = vmatpush.msra.mxu0 0.0
    %105 = vmatpush.msra.mxu0 0.0
    %106 = vmatpush.msra.mxu0 0.0
    %107 = vmatpush.msra.mxu0 %v90
    %108 = vmatpush.msra.mxu0 %v89
    %109 = vmatpush.msra.mxu0 %v88
    %110 = vmatpush.msra.mxu0 %v87
    %111 = vmatpush.msra.mxu0 %v86
    %112 = vmatpush.msra.mxu0 %v85
    %113 = vmatpush.msra.mxu0 %v84
    %114 = vmatpush.msra.mxu0 %v83
    %115 = vmatmul.f32.gmra.mxu0 %v97
    %v116 = vpop.f32.mrf.mxu0
    %v117 = vadd.f32 %v93, %v116
    %118 = vdwg.mxu0
    %v119 = vld [vmem:[#allocation7] sm:$0xff]
    %v120 = vld [vmem:[#allocation7 + $0x8] sm:$0xff]
    %v121 = vld [vmem:[#allocation7 + $0x10] sm:$0xff]
    %v122 = vld [vmem:[#allocation7 + $0x18] sm:$0xff]
    %v123 = vld [vmem:[#allocation7 + $0x20] sm:$0xff]
    %v124 = vld [vmem:[#allocation7 + $0x28] sm:$0xff]
    %v125 = vld [vmem:[#allocation7 + $0x30] sm:$0xff]
    %v126 = vld [vmem:[#allocation7 + $0x38] sm:$0xff]
    %v127 = vld [vmem:[#allocation7 + $0x40] sm:$0xff]
    %v128 = vld [vmem:[#allocation7 + $0x48] sm:$0xff]
    %v129 = vld [vmem:[#allocation7 + $0x50] sm:$0xff]
    %v130 = vld [vmem:[#allocation7 + $0x58] sm:$0xff]
    %v131 = vld [vmem:[#allocation7 + $0x60] sm:$0xff]
    %v132 = vld [vmem:[#allocation7 + $0x68] sm:$0xff]
    %v133 = vld [vmem:[#allocation7 + $0x70] sm:$0xff]
    %v134 = vld [vmem:[#allocation7 + $0x78] sm:$0xff]
    %135 = vmatpush.msra.mxu0 %v134
    %136 = vmatpush.msra.mxu0 %v133
    %137 = vmatpush.msra.mxu0 %v132
    %138 = vmatpush.msra.mxu0 %v131
    %139 = vmatpush.msra.mxu0 %v130
    %140 = vmatpush.msra.mxu0 %v129
    %141 = vmatpush.msra.mxu0 %v128
    %142 = vmatpush.msra.mxu0 %v127
    %143 = vmatpush.msra.mxu0 %v126
    %144 = vmatpush.msra.mxu0 %v125
    %145 = vmatpush.msra.mxu0 %v124
    %146 = vmatpush.msra.mxu0 %v123
    %147 = vmatpush.msra.mxu0 %v122
    %148 = vmatpush.msra.mxu0 %v121
    %149 = vmatpush.msra.mxu0 %v120
    %150 = vmatpush.msra.mxu0 %v119
    %151 = vmatmul.f32.gmra.mxu0 %v117
    %v152 = vpop.f32.mrf.mxu0
    %v153 = vadd.f32 0.0, %v152
    %154 = vdwg.mxu0
    %v155 = vmax.f32 %v153, 0.0
    %v156 = vld [vmem:[#allocation8] sm:$0xff]
    %v157 = vld [vmem:[#allocation8 + $0x8] sm:$0xff]
    %v158 = vld [vmem:[#allocation8 + $0x10] sm:$0xff]
    %v159 = vld [vmem:[#allocation8 + $0x18] sm:$0xff]
    %v160 = vld [vmem:[#allocation8 + $0x20] sm:$0xff]
    %v161 = vld [vmem:[#allocation8 + $0x28] sm:$0xff]
    %v162 = vld [vmem:[#allocation8 + $0x30] sm:$0xff]
    %v163 = vld [vmem:[#allocation8 + $0x38] sm:$0xff]
    %v164 = vld [vmem:[#allocation8 + $0x40] sm:$0xff]
    %v165 = vld [vmem:[#allocation8 + $0x48] sm:$0xff]
    %v166 = vld [vmem:[#allocation8 + $0x50] sm:$0xff]
    %v167 = vld [vmem:[#allocation8 + $0x58] sm:$0xff]
    %v168 = vld [vmem:[#allocation8 + $0x60] sm:$0xff]
    %v169 = vld [vmem:[#allocation8 + $0x68] sm:$0xff]
    %v170 = vld [vmem:[#allocation8 + $0x70] sm:$0xff]
    %v171 = vld [vmem:[#allocation8 + $0x78] sm:$0xff]
    %172 = vmatpush.msra.mxu0 %v171
    %173 = vmatpush.msra.mxu0 %v170
    %174 = vmatpush.msra.mxu0 %v169
    %175 = vmatpush.msra.mxu0 %v168
    %176 = vmatpush.msra.mxu0 %v167
    %177 = vmatpush.msra.mxu0 %v166
    %178 = vmatpush.msra.mxu0 %v165
    %179 = vmatpush.msra.mxu0 %v164
    %180 = vmatpush.msra.mxu0 %v163
    %181 = vmatpush.msra.mxu0 %v162
    %182 = vmatpush.msra.mxu0 %v161
    %183 = vmatpush.msra.mxu0 %v160
    %184 = vmatpush.msra.mxu0 %v159
    %185 = vmatpush.msra.mxu0 %v158
    %186 = vmatpush.msra.mxu0 %v157
    %187 = vmatpush.msra.mxu0 %v156
    %188 = vmatmul.f32.gmra.mxu0 %v155
    %v189 = vpop.f32.mrf.mxu0
    %v190 = vadd.f32 0.0, %v189
    %191 = vdwg.mxu0
    %v192 = vxor.u32 %v190, 2147483648
    %v193 = vmul.f32 %v192, 1.442695
    %v194 = vpow.pop %v193
    %v195 = vadd.f32 %v194, 1.0
    %v196 = vrcp.pop %v195
    %v197 = vmul.f32 %v195, %v196
    %v198 = vsub.f32 1.0, %v197
    %v199 = vmul.f32 %v196, %v198
    %v200 = vadd.f32 %v196, %v199
    %vm201 = vweird.f32 %v195
    %vm202 = vweird.f32 %v196
    %vm203 = vmor %vm201, %vm202
    %v204 = vsel %vm203, %v196, %v200
    %v205 = vand.u32 2147483647, %v195
    %vm206 = vcmp.eq.f32.partialorder %v205, 8.507059e+37
    %v207 = vand.u32 %v195, 2147483648
    %v208 = vor.u32 1.1754944e-38, %v207
    %v209 = vsel %vm206, %v208, %v204
    %v210 = vmul.f32 1.0, %v209
    %v211 = vmul.f32 %v117, %v210
    %212 = vst [vmem:[#allocation10] sm:$0xff] %v211
    // Predicated region
    $region38: #{tpu_custom_call.1} parent=1 // pred_check
      _
    $region39: #{tpu_custom_call.1} parent=1 // pred_check_branch
      %214 = sbr.rel (0) target = $region41
    $region40: #{tpu_custom_call.1} parent=1 // pred_region
      %216 = vsyncadd [#allocation4], 0
      %s218 = sshll.u32 [#allocation10], 4
      %s219 = int_to_ptr.vmem [resolvable:$true] %s218
      %s220 = sshll.u32 %s5, 4
      %s221 = int_to_ptr.hbm [resolvable:$true] %s220
      %223 = dma.vmem_to_hbm [thread:$0]  %s219, 128, %s221, [#allocation4]
    $region41: #{tpu_custom_call.1} parent=1 // pred_fallthru
      _
    // Predicated region
    $region42: #{tpu_custom_call.1} parent=1 // pred_check
      _
    $region43: #{tpu_custom_call.1} parent=1 // pred_check_branch
      %225 = sbr.rel (0) target = $region45
    $region44: #{tpu_custom_call.1} parent=1 // pred_region
      %227 = dma.done [#allocation4], 128
    $region45: #{tpu_custom_call.1} parent=1 // pred_fallthru
      _
    %228 = vsyncpa [#allocation3], 1
    %229 = vsyncpa [#allocation6], 1
    %230 = vsyncpa [#allocation9], 1
    %231 = vsyncpa [#allocation4], 1

</llo_original>
